<compile_context>
chip_gen: v7x
topology: tpu7x:2x2x1
jax: 0.10.0
libtpu: 0.0.40
codegen_flags: <defaults>
</compile_context>

<pallas_src>
import jax
import jax.numpy as jnp
from jax.experimental import pallas as pl
from jax.experimental.pallas import tpu as pltpu

LANE = 128
SUB = 8          # f32 sublane packing; batch tiles are multiples of this


def _round_up(x, m):
    return ((x + m - 1) // m) * m


def value_net_kernel(x_ref, w1_ref, b1_ref, w2_ref, b2_ref, wv_ref, bv_ref, o_ref):
    # x arrives in f32; cast to the MXU compute dtype on the VPU (idle slot).
    x = x_ref[...].astype(w1_ref.dtype)
    # fc1 + relu (MXU matmul, f32 accumulation; bias/ReLU in f32 on the VPU)
    h = jnp.dot(x, w1_ref[...], preferred_element_type=jnp.float32)
    h = jnp.maximum(h + b1_ref[...], 0.0)
    # fc2 + relu
    h = jnp.dot(h.astype(w2_ref.dtype), w2_ref[...],
                preferred_element_type=jnp.float32)
    h = jnp.maximum(h + b2_ref[...], 0.0)
    # value head (fc2 -> 1): VPU multiply + XLU cross-lane reduce
    v = jnp.sum(h * wv_ref[...], axis=-1, keepdims=True) + bv_ref[...]   # (tb, 1)
    o_ref[...] = v.astype(o_ref.dtype)       # direct (tb, 1) store, no broadcast


def prepare_params(params, compute_dtype=jnp.bfloat16):
    """One-time layout prep of PyTorch-style (out, in) params for the kernel.

    Hoisted out of the forward pass: pad / transpose / cast the weights once
    (at init or whenever params change).  Each forward then only DMAs the
    already-laid-out weights into VMEM via the resident BlockSpecs.
    """
    w1, b1 = params["fc1"]      # (fc1, in), (fc1,)
    w2, b2 = params["fc2"]      # (fc2, fc1), (fc2,)
    wv, bv = params["v"]        # (1, fc2), (1,)

    in_dims = w1.shape[1]
    f1, f2 = w1.shape[0], w2.shape[0]
    f1_p, f2_p = _round_up(f1, LANE), _round_up(f2, LANE)

    # Weights as (in, out) with the output (lane) dim padded to 128-multiples.
    # K dims are left unpadded: full-dim block shapes are legal and Mosaic
    # pads them internally; padded output lanes are zero so fc2 / the value
    # head see exact zeros there.
    w1t = jnp.zeros((in_dims, f1_p), compute_dtype).at[:, :f1].set(
        w1.T.astype(compute_dtype))
    w2t = jnp.zeros((f1_p, f2_p), compute_dtype).at[:f1, :f2].set(
        w2.T.astype(compute_dtype))
    wvr = jnp.zeros((1, f2_p), jnp.float32).at[:, :f2].set(wv.astype(jnp.float32))
    b1r = jnp.zeros((1, f1_p), jnp.float32).at[:, :f1].set(b1.astype(jnp.float32))
    b2r = jnp.zeros((1, f2_p), jnp.float32).at[:, :f2].set(b2.astype(jnp.float32))
    bvr = bv.astype(jnp.float32).reshape(1, 1)
    return {"w1t": w1t, "b1r": b1r, "w2t": w2t, "b2r": b2r,
            "wvr": wvr, "bvr": bvr}


def value_network_forward(x, prep, *, block_b=256):
    """x: (B, input_dims) f32. prep: output of prepare_params. Returns (B, 1) f32."""
    w1t, b1r = prep["w1t"], prep["b1r"]
    w2t, b2r = prep["w2t"], prep["b2r"]
    wvr, bvr = prep["wvr"], prep["bvr"]

    B, in_dims = x.shape
    assert in_dims == w1t.shape[0], "x feature dim does not match prepared params"
    f1_p, f2_p = w1t.shape[1], w2t.shape[1]

    # Batch tile: sublane multiple; aim for >= 4 grid steps when B allows it
    # (keeps both v7x TensorCores busy on the "parallel" axis and gives the
    # software pipeline steps to overlap), capped at block_b.
    tb = min(_round_up(block_b, SUB),
             max(SUB, _round_up(-(-B // 4), SUB)))
    grid_b = pl.cdiv(B, tb)
    b_p = grid_b * tb

    # Only the batch dim is (cheaply) padded; features pass at full width and
    # x stays f32 (cast happens in-kernel).
    x_p = x if b_p == B else jnp.zeros((b_p, in_dims), x.dtype).at[:B].set(x)

    def resident(shape):   # VMEM-resident across all batch tiles
        return pl.BlockSpec(shape, lambda i: (0, 0))

    weight_bytes = sum(a.size * a.dtype.itemsize
                       for a in (w1t, b1r, w2t, b2r, wvr, bvr))
    flops = 2 * b_p * (in_dims * f1_p + f1_p * f2_p + f2_p)
    bytes_accessed = (x_p.size * x_p.dtype.itemsize + weight_bytes + b_p * 4)
    cost = pl.CostEstimate(flops=flops, transcendentals=0,
                           bytes_accessed=bytes_accessed)

    # Explicit VMEM budget (v7x: 64 MiB physical / 32 MiB default scoped):
    # weights (worst-case double buffered) + pipelined x/out tiles + f32
    # intermediates + headroom.
    vmem_need = (2 * weight_bytes
                 + 2 * (tb * in_dims * 4 + tb * 4)
                 + 4 * tb * (f1_p + f2_p) * 4
                 + (4 << 20))
    vmem_limit = int(max(32 << 20, min(vmem_need, 64 << 20)))

    out = pl.pallas_call(
        value_net_kernel,
        out_shape=jax.ShapeDtypeStruct((b_p, 1), jnp.float32),
        grid_spec=pltpu.PrefetchScalarGridSpec(
            num_scalar_prefetch=0,
            grid=(grid_b,),
            in_specs=[
                pl.BlockSpec((tb, in_dims), lambda i: (i, 0)),   # x tile (f32)
                resident((in_dims, f1_p)),                       # W1^T
                resident((1, f1_p)),                             # b1
                resident((f1_p, f2_p)),                          # W2^T
                resident((1, f2_p)),                             # b2
                resident((1, f2_p)),                             # wv row
                resident((1, 1)),                                # bv
            ],
            out_specs=pl.BlockSpec((tb, 1), lambda i: (i, 0)),
        ),
        compiler_params=pltpu.CompilerParams(
            dimension_semantics=("parallel",),
            vmem_limit_bytes=vmem_limit),
        cost_estimate=cost,
    )(x_p, w1t, b1r, w2t, b2r, wvr, bvr)

    return out[:B] if b_p != B else out


def init_params(key, input_dims, fc1_dims, fc2_dims):
    """Deterministic init mimicking nn.Linear default (uniform +/- 1/sqrt(fan_in))."""
    def linear(k, fan_in, fan_out):
        kw, kb = jax.random.split(k)
        bound = 1.0 / jnp.sqrt(fan_in)
        w = jax.random.uniform(kw, (fan_out, fan_in), jnp.float32, -bound, bound)
        b = jax.random.uniform(kb, (fan_out,), jnp.float32, -bound, bound)
        return w, b

    k1, k2, k3 = jax.random.split(key, 3)
    return {
        "fc1": linear(k1, input_dims, fc1_dims),
        "fc2": linear(k2, fc1_dims, fc2_dims),
        "v": linear(k3, fc2_dims, 1),
    }


def reference_forward(x, params):
    w1, b1 = params["fc1"]
    w2, b2 = params["fc2"]
    wv, bv = params["v"]
    hp = jax.lax.Precision.HIGHEST
    h = jnp.maximum(jnp.dot(x, w1.T, precision=hp) + b1, 0.0)
    h = jnp.maximum(jnp.dot(h, w2.T, precision=hp) + b2, 0.0)
    return jnp.dot(h, wv.T, precision=hp) + bv


# TODO(synk): optimizer (Adam), checkpoint save/load and device placement from
# the PyTorch module are training/infra concerns with no Pallas equivalent.

if __name__ == "__main__":
    key = jax.random.PRNGKey(0)
    kx, kp = jax.random.split(key)

    # Small shapes consistent with the module: state = (batch, input_dims)
    batch, input_dims, fc1_dims, fc2_dims = 8, 16, 32, 32

    x = jax.random.normal(kx, (batch, input_dims), jnp.float32)
    params = init_params(kp, input_dims, fc1_dims, fc2_dims)

    v_ref = reference_forward(x, params)

    # f32 MXU path (tight check, valid on all generations).
    prep_f32 = prepare_params(params, compute_dtype=jnp.float32)
    v_f32 = value_network_forward(x, prep_f32)
    jax.block_until_ready(v_f32)
    assert v_f32.shape == (batch, 1)
    assert jnp.allclose(v_f32, v_ref, atol=1e-4, rtol=1e-4)

    # bf16 MXU operands, f32 accumulation (default fast path, incl. v5e).
    prep_bf16 = prepare_params(params, compute_dtype=jnp.bfloat16)
    v_bf16 = value_network_forward(x, prep_bf16)
    jax.block_until_ready(v_bf16)
    assert v_bf16.shape == (batch, 1)
    assert jnp.allclose(v_bf16, v_ref, atol=5e-2, rtol=5e-2)

    print("KERNEL_OK")
</pallas_src>

<mosaic_0001>
module attributes {stable_mosaic.version = 11 : i64} {
  func.func @value_net_kernel(%arg0: i32, %arg1: memref<8x16xf32, #tpu.memory_space<vmem>>, %arg2: memref<16x128xf32, #tpu.memory_space<vmem>>, %arg3: memref<1x128xf32, #tpu.memory_space<vmem>>, %arg4: memref<128x128xf32, #tpu.memory_space<vmem>>, %arg5: memref<1x128xf32, #tpu.memory_space<vmem>>, %arg6: memref<1x128xf32, #tpu.memory_space<vmem>>, %arg7: memref<1x1xf32, #tpu.memory_space<vmem>>, %arg8: memref<8x1xf32, #tpu.memory_space<vmem>>) attributes {dimension_semantics = [#tpu.dimension_semantics<parallel>], iteration_bounds = array<i64: 1>, scalar_prefetch = 0 : i64, scratch_operands = 0 : i64, tpu.core_type = #tpu.core_type<tc>, window_params = [{transform_indices = @transform_0, window_bounds = array<i64: 8, 16>}, {pipeline_mode = #tpu.pipeline_mode<synchronous>, transform_indices = @transform_1, window_bounds = array<i64: 16, 128>}, {pipeline_mode = #tpu.pipeline_mode<synchronous>, transform_indices = @transform_2, window_bounds = array<i64: 1, 128>}, {pipeline_mode = #tpu.pipeline_mode<synchronous>, transform_indices = @transform_3, window_bounds = array<i64: 128, 128>}, {pipeline_mode = #tpu.pipeline_mode<synchronous>, transform_indices = @transform_4, window_bounds = array<i64: 1, 128>}, {pipeline_mode = #tpu.pipeline_mode<synchronous>, transform_indices = @transform_5, window_bounds = array<i64: 1, 128>}, {pipeline_mode = #tpu.pipeline_mode<synchronous>, transform_indices = @transform_6, window_bounds = array<i64: 1, 1>}, {transform_indices = @transform_7, window_bounds = array<i64: 8, 1>}]} {
    %c0 = arith.constant 0 : index
    %c0_0 = arith.constant 0 : index
    %0 = vector.load %arg1[%c0, %c0_0] : memref<8x16xf32, #tpu.memory_space<vmem>>, vector<8x16xf32>
    %c0_1 = arith.constant 0 : index
    %c0_2 = arith.constant 0 : index
    %1 = vector.load %arg2[%c0_1, %c0_2] : memref<16x128xf32, #tpu.memory_space<vmem>>, vector<16x128xf32>
    %cst = arith.constant dense<0.000000e+00> : vector<8x128xf32>
    %2 = tpu.matmul %0, %1, %cst {dimension_numbers = #tpu.dot_dimension_numbers<[1], [0], [0], [1], [0, 0, 1, 1], [], []>} : vector<8x16xf32>, vector<16x128xf32>, vector<8x128xf32> -> vector<8x128xf32>
    %c0_3 = arith.constant 0 : index
    %c0_4 = arith.constant 0 : index
    %3 = vector.load %arg3[%c0_3, %c0_4] : memref<1x128xf32, #tpu.memory_space<vmem>>, vector<1x128xf32>
    %4 = vector.broadcast %3 : vector<1x128xf32> to vector<8x128xf32>
    %5 = arith.addf %2, %4 : vector<8x128xf32>
    %cst_5 = arith.constant 0.000000e+00 : f32
    %6 = vector.broadcast %cst_5 : f32 to vector<8x128xf32>
    %7 = arith.maximumf %5, %6 : vector<8x128xf32>
    %c0_6 = arith.constant 0 : index
    %c0_7 = arith.constant 0 : index
    %8 = vector.load %arg4[%c0_6, %c0_7] : memref<128x128xf32, #tpu.memory_space<vmem>>, vector<128x128xf32>
    %cst_8 = arith.constant dense<0.000000e+00> : vector<8x128xf32>
    %9 = tpu.matmul %7, %8, %cst_8 {dimension_numbers = #tpu.dot_dimension_numbers<[1], [0], [0], [1], [0, 0, 1, 1], [], []>} : vector<8x128xf32>, vector<128x128xf32>, vector<8x128xf32> -> vector<8x128xf32>
    %c0_9 = arith.constant 0 : index
    %c0_10 = arith.constant 0 : index
    %10 = vector.load %arg5[%c0_9, %c0_10] : memref<1x128xf32, #tpu.memory_space<vmem>>, vector<1x128xf32>
    %11 = vector.broadcast %10 : vector<1x128xf32> to vector<8x128xf32>
    %12 = arith.addf %9, %11 : vector<8x128xf32>
    %cst_11 = arith.constant 0.000000e+00 : f32
    %13 = vector.broadcast %cst_11 : f32 to vector<8x128xf32>
    %14 = arith.maximumf %12, %13 : vector<8x128xf32>
    %c0_12 = arith.constant 0 : index
    %c0_13 = arith.constant 0 : index
    %15 = vector.load %arg6[%c0_12, %c0_13] : memref<1x128xf32, #tpu.memory_space<vmem>>, vector<1x128xf32>
    %16 = vector.broadcast %15 : vector<1x128xf32> to vector<8x128xf32>
    %17 = arith.mulf %14, %16 : vector<8x128xf32>
    %cst_14 = arith.constant dense<0.000000e+00> : vector<8xf32>
    %18 = vector.multi_reduction <add>, %17, %cst_14 [1] : vector<8x128xf32> to vector<8xf32>
    %19 = vector.shape_cast %18 : vector<8xf32> to vector<8x1xf32>
    %c0_15 = arith.constant 0 : index
    %c0_16 = arith.constant 0 : index
    %20 = vector.load %arg7[%c0_15, %c0_16] : memref<1x1xf32, #tpu.memory_space<vmem>>, vector<1x1xf32>
    %21 = vector.broadcast %20 : vector<1x1xf32> to vector<8x1xf32>
    %22 = arith.addf %19, %21 : vector<8x1xf32>
    %c0_17 = arith.constant 0 : index
    %c0_18 = arith.constant 0 : index
    %23 = vector.load %arg8[%c0_17, %c0_18] : memref<8x1xf32, #tpu.memory_space<vmem>>, vector<8x1xf32>
    tpu.vector_store %arg8[%c0_17, %c0_18], %22 {strides = array<i32>} : memref<8x1xf32, #tpu.memory_space<vmem>>, vector<8x1xf32>,
    return
  }
  func.func @transform_0(%arg0: i32) -> (i32, i32) {
    %c0_i32 = arith.constant 0 : i32
    %c0_i32_0 = arith.constant 0 : i32
    return %arg0, %c0_i32 : i32, i32
  }
  func.func @transform_1(%arg0: i32) -> (i32, i32) {
    %c0_i32 = arith.constant 0 : i32
    %c0_i32_0 = arith.constant 0 : i32
    %c0_i32_1 = arith.constant 0 : i32
    return %c0_i32, %c0_i32_0 : i32, i32
  }
  func.func @transform_2(%arg0: i32) -> (i32, i32) {
    %c0_i32 = arith.constant 0 : i32
    %c0_i32_0 = arith.constant 0 : i32
    %c0_i32_1 = arith.constant 0 : i32
    return %c0_i32, %c0_i32_0 : i32, i32
  }
  func.func @transform_3(%arg0: i32) -> (i32, i32) {
    %c0_i32 = arith.constant 0 : i32
    %c0_i32_0 = arith.constant 0 : i32
    %c0_i32_1 = arith.constant 0 : i32
    return %c0_i32, %c0_i32_0 : i32, i32
  }
  func.func @transform_4(%arg0: i32) -> (i32, i32) {
    %c0_i32 = arith.constant 0 : i32
    %c0_i32_0 = arith.constant 0 : i32
    %c0_i32_1 = arith.constant 0 : i32
    return %c0_i32, %c0_i32_0 : i32, i32
  }
  func.func @transform_5(%arg0: i32) -> (i32, i32) {
    %c0_i32 = arith.constant 0 : i32
    %c0_i32_0 = arith.constant 0 : i32
    %c0_i32_1 = arith.constant 0 : i32
    return %c0_i32, %c0_i32_0 : i32, i32
  }
  func.func @transform_6(%arg0: i32) -> (i32, i32) {
    %c0_i32 = arith.constant 0 : i32
    %c0_i32_0 = arith.constant 0 : i32
    %c0_i32_1 = arith.constant 0 : i32
    return %c0_i32, %c0_i32_0 : i32, i32
  }
  func.func @transform_7(%arg0: i32) -> (i32, i32) {
    %c0_i32 = arith.constant 0 : i32
    %c0_i32_0 = arith.constant 0 : i32
    return %arg0, %c0_i32 : i32, i32
  }
}

</mosaic_0001>

<llo_original>
// kernel: tpu_custom_call.1
$region0: #{tpu_custom_call.1}
  #allocation0 [shape = 'u32[]', space=smem, size = 0x4, offset = 0x4, fixed_abs, tag = 'smem constant byte address 0x4 - core index']
  #allocation1 [shape = 'u32[144,128]{1,0:T(1,128)}', space=vmem, size = 0x12000, scoped, tag = 'internal scratch']
  #allocation2 [shape = 'f32[1,1]{1,0:T(1,128)S(1)}', space=vmem, size = 0x200, scoped, tag = 'scoped memory for tpu_custom_call.1']
  %s0 = inlined_call_operand.hbm [shape: f32[8,16], index: 0, kind: input, shape index: {}]
  %s1 = inlined_call_operand.hbm [shape: f32[16,128], index: 1, kind: input, shape index: {}]
  %s2 = inlined_call_operand.vmem [shape: f32[1,128], index: 2, kind: input, shape index: {}]
  %s3 = inlined_call_operand.hbm [shape: f32[128,128], index: 3, kind: input, shape index: {}]
  %s4 = inlined_call_operand.vmem [shape: f32[1,128], index: 4, kind: input, shape index: {}]
  %s5 = inlined_call_operand.vmem [shape: f32[1,128], index: 5, kind: input, shape index: {}]
  %s6 = inlined_call_operand.<no memory space> [shape: f32[1,1], index: 6, kind: input, shape index: {}]
  %s7 = inlined_call_operand.vmem [shape: f32[8,1], index: 7, kind: output, shape index: {}]
  %s8 = sld [smem:[#allocation0]]
  $region50: #{tpu_custom_call.1} parent=0
    _
  %s10 = ssub.s32 1, %s8
  %s11 = scalar_select 0, %s10, %s8
  %v12 = vstv %s6
  %13 = vst [vmem:[#allocation2] sm:$0x1] %v12
  $region1: #{tpu_custom_call.1} parent=0
    #allocation3 [shape = 'u8[4096]{0}', space=vmem, size = 0x1000, scoped, tag = 'input window, operand 0, single buffered']
    #allocation4 [shape = 's32[1]{0}', space=sflag, size = 0x4, scoped, tag = 'scoped memory for tpu_custom_call.1']
    #allocation5 [shape = 'u8[8192]{0}', space=vmem, size = 0x2000, scoped, tag = 'input window, operand 1, single buffered']
    #allocation6 [shape = 's32[1]{0}', space=sflag, size = 0x4, scoped, tag = 'scoped memory for tpu_custom_call.1']
    #allocation7 [shape = 'u8[65536]{0}', space=vmem, size = 0x10000, scoped, tag = 'input window, operand 3, single buffered']
    %14 = vsyncpa [#allocation4], 0
    %15 = vsyncpa [#allocation6], 0
    // Predicated region
    $region2: #{tpu_custom_call.1} parent=1 // pred_check
      _
    $region3: #{tpu_custom_call.1} parent=1 // pred_check_branch
      %17 = sbr.rel (0) target = $region5
    $region4: #{tpu_custom_call.1} parent=1 // pred_region
      %s19 = ssub.s32 128, 128
      %20 = vsyncadd [#allocation4], %s19
      %s22 = sshll.u32 [#allocation3], 4
      %s23 = int_to_ptr.vmem [resolvable:$true] %s22
      %25 = dma.hbm_to_vmem [thread:$0]  %s0, 128, %s23, [#allocation4]
    $region5: #{tpu_custom_call.1} parent=1 // pred_fallthru
      _
    // Predicated region
    $region6: #{tpu_custom_call.1} parent=1 // pred_check
      _
    $region7: #{tpu_custom_call.1} parent=1 // pred_check_branch
      %27 = sbr.rel (0) target = $region9
    $region8: #{tpu_custom_call.1} parent=1 // pred_region
      %s29 = ssub.s32 256, 256
      %30 = vsyncadd [#allocation6], %s29
      %s31 = sshll.u32 [#allocation5], 4
      %s32 = int_to_ptr.vmem [resolvable:$true] %s31
      %37 = dma.hbm_to_vmem [thread:$0]  %s1, 256, %s32, [#allocation6], 128, 128, 8
    $region9: #{tpu_custom_call.1} parent=1 // pred_fallthru
      _
    // Predicated region
    $region10: #{tpu_custom_call.1} parent=1 // pred_check
      _
    $region11: #{tpu_custom_call.1} parent=1 // pred_check_branch
      %39 = sbr.rel (0) target = $region13
    $region12: #{tpu_custom_call.1} parent=1 // pred_region
      _
    $region13: #{tpu_custom_call.1} parent=1 // pred_fallthru
      _
    // Predicated region
    $region14: #{tpu_custom_call.1} parent=1 // pred_check
      _
    $region15: #{tpu_custom_call.1} parent=1 // pred_check_branch
      %41 = sbr.rel (0) target = $region17
    $region16: #{tpu_custom_call.1} parent=1 // pred_region
      %s43 = ssub.s32 2048, 2048
      %44 = vsyncadd [#allocation6], %s43
      %s45 = sshll.u32 [#allocation7], 4
      %s46 = int_to_ptr.vmem [resolvable:$true] %s45
      %51 = dma.hbm_to_vmem [thread:$0]  %s3, 2048, %s46, [#allocation6], 128, 128, 8
    $region17: #{tpu_custom_call.1} parent=1 // pred_fallthru
      _
    // Predicated region
    $region18: #{tpu_custom_call.1} parent=1 // pred_check
      _
    $region19: #{tpu_custom_call.1} parent=1 // pred_check_branch
      %53 = sbr.rel (0) target = $region21
    $region20: #{tpu_custom_call.1} parent=1 // pred_region
      _
    $region21: #{tpu_custom_call.1} parent=1 // pred_fallthru
      _
    // Predicated region
    $region22: #{tpu_custom_call.1} parent=1 // pred_check
      _
    $region23: #{tpu_custom_call.1} parent=1 // pred_check_branch
      %55 = sbr.rel (0) target = $region25
    $region24: #{tpu_custom_call.1} parent=1 // pred_region
      _
    $region25: #{tpu_custom_call.1} parent=1 // pred_fallthru
      _
    // Predicated region
    $region26: #{tpu_custom_call.1} parent=1 // pred_check
      _
    $region27: #{tpu_custom_call.1} parent=1 // pred_check_branch
      %57 = sbr.rel (0) target = $region29
    $region28: #{tpu_custom_call.1} parent=1 // pred_region
      _
    $region29: #{tpu_custom_call.1} parent=1 // pred_fallthru
      _
    // Predicated region
    $region30: #{tpu_custom_call.1} parent=1 // pred_check
      _
    $region31: #{tpu_custom_call.1} parent=1 // pred_check_branch
      %59 = sbr.rel (0) target = $region33
    $region32: #{tpu_custom_call.1} parent=1 // pred_region
      %60 = dma.done [#allocation4], 128
    $region33: #{tpu_custom_call.1} parent=1 // pred_fallthru
      _
    // Predicated region
    $region34: #{tpu_custom_call.1} parent=1 // pred_check
      _
    $region35: #{tpu_custom_call.1} parent=1 // pred_check_branch
      %62 = sbr.rel (0) target = $region37
    $region36: #{tpu_custom_call.1} parent=1 // pred_region
      %63 = dma.done [#allocation6], 256
    $region37: #{tpu_custom_call.1} parent=1 // pred_fallthru
      _
    // Predicated region
    $region38: #{tpu_custom_call.1} parent=1 // pred_check
      _
    $region39: #{tpu_custom_call.1} parent=1 // pred_check_branch
      %65 = sbr.rel (0) target = $region41
    $region40: #{tpu_custom_call.1} parent=1 // pred_region
      %66 = dma.done [#allocation6], 2048
    $region41: #{tpu_custom_call.1} parent=1 // pred_fallthru
      _
    %v67 = vld [vmem:[#allocation3] sm:$0xff]
    %v68 = vld [vmem:[#allocation5] sm:$0xff]
    %v69 = vld [vmem:[#allocation5 + $0x8] sm:$0xff]
    %v70 = vld [vmem:[%s2] sm:$0x1]
    %v72 = vlaneseq
    %v73 = vshrl.u32 %v72, 7
    %v74 = vsub.s32 0, %v73
    %v75 = vrot.slane %v70, %v74
    %vm77 = vcmask 130048
    %v79 = vsel %vm77, %v67, 0
    %81 = vmatprep.subr.mxu0 0.0
    %82 = vmatpush1.msra.mxu0 %v68
    %83 = vmatprep.subr.mxu0 0.0
    %84 = vmatpush1.msra.mxu0 %v69
    %85 = vmatprep.subr.mxu0 0.0
    %86 = vmatpush1.msra.mxu0 0.0
    %87 = vmatprep.subr.mxu0 0.0
    %88 = vmatpush1.msra.mxu0 0.0
    %89 = vmatprep.subr.mxu0 0.0
    %90 = vmatpush1.msra.mxu0 0.0
    %91 = vmatprep.subr.mxu0 0.0
    %92 = vmatpush1.msra.mxu0 0.0
    %93 = vmatprep.subr.mxu0 0.0
    %94 = vmatpush1.msra.mxu0 0.0
    %95 = vmatprep.subr.mxu0 0.0
    %96 = vmatpush1.msra.mxu0 0.0
    %97 = vmatprep.subr.mxu0 0.0
    %98 = vmatpush1.msra.mxu0 0.0
    %99 = vmatprep.subr.mxu0 0.0
    %100 = vmatpush1.msra.mxu0 0.0
    %101 = vmatprep.subr.mxu0 0.0
    %102 = vmatpush1.msra.mxu0 0.0
    %103 = vmatprep.subr.mxu0 0.0
    %104 = vmatpush1.msra.mxu0 0.0
    %105 = vmatprep.subr.mxu0 0.0
    %106 = vmatpush1.msra.mxu0 0.0
    %107 = vmatprep.subr.mxu0 0.0
    %108 = vmatpush1.msra.mxu0 0.0
    %109 = vmatprep.subr.mxu0 0.0
    %110 = vmatpush1.msra.mxu0 0.0
    %111 = vmatprep.subr.mxu0 0.0
    %112 = vmatpush1.msra.mxu0 0.0
    %113 = vmatprep.subr.mxu0 0.0
    %114 = vmatpush1.msra.mxu0 0.0
    %115 = vmatprep.subr.mxu0 0.0
    %116 = vmatpush1.msra.mxu0 0.0
    %117 = vmatprep.subr.mxu0 0.0
    %118 = vmatpush1.msra.mxu0 0.0
    %119 = vmatprep.subr.mxu0 0.0
    %120 = vmatpush1.msra.mxu0 0.0
    %121 = vmatprep.subr.mxu0 0.0
    %122 = vmatpush1.msra.mxu0 0.0
    %123 = vmatprep.subr.mxu0 0.0
    %124 = vmatpush1.msra.mxu0 0.0
    %125 = vmatprep.subr.mxu0 0.0
    %126 = vmatpush1.msra.mxu0 0.0
    %127 = vmatprep.subr.mxu0 0.0
    %128 = vmatpush1.msra.mxu0 0.0
    %129 = vmatprep.subr.mxu0 0.0
    %130 = vmatpush1.msra.mxu0 0.0
    %131 = vmatprep.subr.mxu0 0.0
    %132 = vmatpush1.msra.mxu0 0.0
    %133 = vmatprep.subr.mxu0 0.0
    %134 = vmatpush1.msra.mxu0 0.0
    %135 = vmatprep.subr.mxu0 0.0
    %136 = vmatpush1.msra.mxu0 0.0
    %137 = vmatprep.subr.mxu0 0.0
    %138 = vmatpush1.msra.mxu0 0.0
    %139 = vmatprep.subr.mxu0 0.0
    %140 = vmatpush1.msra.mxu0 0.0
    %141 = vmatprep.subr.mxu0 0.0
    %142 = vmatpush1.msra.mxu0 0.0
    %143 = vmatprep.subr.mxu0 0.0
    %144 = vmatpush1.msra.mxu0 0.0
    %145 = vmatprep.mubr.f32.mxu0 0.0
    %146 = vmatmul.mubr.f32.gmra.mrb[0].mxu0 %v79
    %v147 = vpop.f32.mrb[0].mxu0
    %v148 = vadd.f32 %v75, %v147
    %v149 = vpop.f32.mrb[0].mxu0
    %150 = vdwg.mxu0
    %v151 = vmax.f32 %v148, 0.0
    %v152 = vld [vmem:[#allocation7] sm:$0xff]
    %v153 = vld [vmem:[#allocation7 + $0x8] sm:$0xff]
    %v154 = vld [vmem:[#allocation7 + $0x10] sm:$0xff]
    %v155 = vld [vmem:[#allocation7 + $0x18] sm:$0xff]
    %v156 = vld [vmem:[#allocation7 + $0x20] sm:$0xff]
    %v157 = vld [vmem:[#allocation7 + $0x28] sm:$0xff]
    %v158 = vld [vmem:[#allocation7 + $0x30] sm:$0xff]
    %v159 = vld [vmem:[#allocation7 + $0x38] sm:$0xff]
    %v160 = vld [vmem:[#allocation7 + $0x40] sm:$0xff]
    %v161 = vld [vmem:[#allocation7 + $0x48] sm:$0xff]
    %v162 = vld [vmem:[#allocation7 + $0x50] sm:$0xff]
    %v163 = vld [vmem:[#allocation7 + $0x58] sm:$0xff]
    %v164 = vld [vmem:[#allocation7 + $0x60] sm:$0xff]
    %v165 = vld [vmem:[#allocation7 + $0x68] sm:$0xff]
    %v166 = vld [vmem:[#allocation7 + $0x70] sm:$0xff]
    %v167 = vld [vmem:[#allocation7 + $0x78] sm:$0xff]
    %v168 = vld [vmem:[%s4] sm:$0x1]
    %v170 = vlaneseq
    %v171 = vshrl.u32 %v170, 7
    %v172 = vsub.s32 0, %v171
    %v173 = vrot.slane %v168, %v172
    %175 = vmatprep.subr.mxu0 0.0
    %176 = vmatpush1.msra.mxu0 %v152
    %177 = vmatprep.subr.mxu0 0.0
    %178 = vmatpush1.msra.mxu0 %v153
    %179 = vmatprep.subr.mxu0 0.0
    %180 = vmatpush1.msra.mxu0 %v154
    %181 = vmatprep.subr.mxu0 0.0
    %182 = vmatpush1.msra.mxu0 %v155
    %183 = vmatprep.subr.mxu0 0.0
    %184 = vmatpush1.msra.mxu0 %v156
    %185 = vmatprep.subr.mxu0 0.0
    %186 = vmatpush1.msra.mxu0 %v157
    %187 = vmatprep.subr.mxu0 0.0
    %188 = vmatpush1.msra.mxu0 %v158
    %189 = vmatprep.subr.mxu0 0.0
    %190 = vmatpush1.msra.mxu0 %v159
    %191 = vmatprep.subr.mxu0 0.0
    %192 = vmatpush1.msra.mxu0 %v160
    %193 = vmatprep.subr.mxu0 0.0
    %194 = vmatpush1.msra.mxu0 %v161
    %195 = vmatprep.subr.mxu0 0.0
    %196 = vmatpush1.msra.mxu0 %v162
    %197 = vmatprep.subr.mxu0 0.0
    %198 = vmatpush1.msra.mxu0 %v163
    %199 = vmatprep.subr.mxu0 0.0
    %200 = vmatpush1.msra.mxu0 %v164
    %201 = vmatprep.subr.mxu0 0.0
    %202 = vmatpush1.msra.mxu0 %v165
    %203 = vmatprep.subr.mxu0 0.0
    %204 = vmatpush1.msra.mxu0 %v166
    %205 = vmatprep.subr.mxu0 0.0
    %206 = vmatpush1.msra.mxu0 %v167
    %207 = vmatprep.subr.mxu0 0.0
    %208 = vmatpush1.msra.mxu0 0.0
    %209 = vmatprep.subr.mxu0 0.0
    %210 = vmatpush1.msra.mxu0 0.0
    %211 = vmatprep.subr.mxu0 0.0
    %212 = vmatpush1.msra.mxu0 0.0
    %213 = vmatprep.subr.mxu0 0.0
    %214 = vmatpush1.msra.mxu0 0.0
    %215 = vmatprep.subr.mxu0 0.0
    %216 = vmatpush1.msra.mxu0 0.0
    %217 = vmatprep.subr.mxu0 0.0
    %218 = vmatpush1.msra.mxu0 0.0
    %219 = vmatprep.subr.mxu0 0.0
    %220 = vmatpush1.msra.mxu0 0.0
    %221 = vmatprep.subr.mxu0 0.0
    %222 = vmatpush1.msra.mxu0 0.0
    %223 = vmatprep.subr.mxu0 0.0
    %224 = vmatpush1.msra.mxu0 0.0
    %225 = vmatprep.subr.mxu0 0.0
    %226 = vmatpush1.msra.mxu0 0.0
    %227 = vmatprep.subr.mxu0 0.0
    %228 = vmatpush1.msra.mxu0 0.0
    %229 = vmatprep.subr.mxu0 0.0
    %230 = vmatpush1.msra.mxu0 0.0
    %231 = vmatprep.subr.mxu0 0.0
    %232 = vmatpush1.msra.mxu0 0.0
    %233 = vmatprep.subr.mxu0 0.0
    %234 = vmatpush1.msra.mxu0 0.0
    %235 = vmatprep.subr.mxu0 0.0
    %236 = vmatpush1.msra.mxu0 0.0
    %237 = vmatprep.subr.mxu0 0.0
    %238 = vmatpush1.msra.mxu0 0.0
    %239 = vmatprep.mubr.f32.mxu0 0.0
    %240 = vmatmul.mubr.f32.gmra.mrb[0].mxu0 %v151
    %v241 = vpop.f32.mrb[0].mxu0
    %v242 = vadd.f32 %v173, %v241
    %v243 = vpop.f32.mrb[0].mxu0
    %244 = vdwg.mxu0
    %v245 = vmax.f32 %v242, 0.0
    %v246 = vld [vmem:[%s5] sm:$0x1]
    %v248 = vlaneseq
    %v249 = vshrl.u32 %v248, 7
    %v250 = vsub.s32 0, %v249
    %v251 = vrot.slane %v246, %v250
    %v253 = vmul.f32 %v245, %v251
    %254 = vadd.xlane.f32.xlu0 %v253
    %v255 = vpop.xlane.xlu0 %254
    %v256 = vld [vmem:[#allocation2] sm:$0x1]
    %v258 = vlaneseq
    %v259 = vshrl.u32 %v258, 7
    %v260 = vsub.s32 0, %v259
    %v261 = vrot.slane %v256, %v260
    %v263 = vadd.f32 %v255, %v261
    %vm264 = vcmask 7168
    %265 = vst.msk [vmem:[%s7] sm:$0xff] %vm264, %v263
    // Predicated region
    $region42: #{tpu_custom_call.1} parent=1 // pred_check
      _
    $region43: #{tpu_custom_call.1} parent=1 // pred_check_branch
      %267 = sbr.rel (0) target = $region45
    $region44: #{tpu_custom_call.1} parent=1 // pred_region
      _
    $region45: #{tpu_custom_call.1} parent=1 // pred_fallthru
      _
    // Predicated region
    $region46: #{tpu_custom_call.1} parent=1 // pred_check
      _
    $region47: #{tpu_custom_call.1} parent=1 // pred_check_branch
      %269 = sbr.rel (0) target = $region49
    $region48: #{tpu_custom_call.1} parent=1 // pred_region
      _
    $region49: #{tpu_custom_call.1} parent=1 // pred_fallthru
      _
    %270 = vsyncpa [#allocation4], 1
    %271 = vsyncpa [#allocation6], 1

</llo_original>
